<compile_context>
chip_gen: v7x
topology: tpu7x:2x2x1
jax: 0.10.0
libtpu: 0.0.40
codegen_flags: <defaults>
</compile_context>

<pallas_src>
import functools

import jax
import jax.numpy as jnp
from jax import lax
from jax.experimental import pallas as pl
from jax.experimental.pallas import tpu as pltpu

LANES = 128            # vreg lane width
CHUNK_ROWS = 128       # compute granularity inside a block (16 vregs / array)
MAX_BLOCK_ROWS = 2048  # 2048 rows * 128 lanes * 4 B = 1 MiB per input per step


# ----------------------------------------------------------------------------
# Tiling / host-side (zero-copy) layout helpers
# ----------------------------------------------------------------------------
def _plan_tiling(rows):
    """Return (block_rows, chunk_rows, num_blocks) for a (rows, 128) slab."""
    rows = max(rows, 1)
    if rows <= CHUNK_ROWS:
        # Tiny problem: one block, one chunk (block dims == full array dims).
        return rows, rows, 1
    # Keep at least 2 blocks so a v7x megacore can split the grid, cap the
    # block at ~1 MiB per input, and keep it a multiple of the chunk size.
    half = -(-rows // 2)
    block_rows = min(MAX_BLOCK_ROWS, -(-half // CHUNK_ROWS) * CHUNK_ROWS)
    num_blocks = -(-rows // block_rows)
    return block_rows, CHUNK_ROWS, num_blocks


def _to_lane_rows(boxes):
    """(n, 4) boxes -> flat lane-dense (rows, 128) view.

    Row-major (n, 4) and (rows, 128) share the same linear layout, so this is
    a free reshape; a copy (pad) only happens when 4*n % 128 != 0.
    """
    n, c = boxes.shape
    assert c == 4, "boxes must be (n, 4) in (x1, y1, x2, y2) format"
    flat = boxes.reshape(-1)
    pad = (-(4 * n)) % LANES
    if pad:
        flat = jnp.pad(flat, (0, pad))
    return flat.reshape(-1, LANES)


def _vmem_limit(block_bytes):
    # 2 inputs x 2 pipeline buffers x block + headroom; never above the scoped
    # VMEM default of any generation (v5e 16 MiB, v6e 32 MiB, v7x 32 MiB).
    return int(max(16 * 1024 * 1024, 4 * block_bytes + (4 << 20)))


# ----------------------------------------------------------------------------
# In-kernel math
# ----------------------------------------------------------------------------
def _lane_shift_up(x, k):
    """result[..., j] = x[..., (j + k) % 128]  (pull values k lanes 'above')."""
    return pltpu.roll(x, LANES - k, axis=1)


def _adiou_pair_tile(pred, target, eps_y, a, eps):
    """ADIoU loss on an interleaved (R, 128) tile pair.

    Lane layout (period 4): lane 4k -> x1, 4k+1 -> y1, 4k+2 -> x2, 4k+3 -> y2
    of box (32*row + k).  x/y "leg" quantities are computed in the (4k, 4k+1)
    lane pair with shared instructions; the final per-box loss is valid at
    lanes 4k only (other lanes hold garbage and are masked / sliced away).
    """
    p_lo = pred.astype(jnp.float32)                 # lane 4k: x1, 4k+1: y1
    t_lo = target.astype(jnp.float32)
    p_hi = _lane_shift_up(p_lo, 2)                  # lane 4k: x2, 4k+1: y2
    t_hi = _lane_shift_up(t_lo, 2)

    size1 = p_hi - p_lo + eps_y                     # 4k: w1, 4k+1: h1 (+eps)
    size2 = t_hi - t_lo + eps_y                     # 4k: w2, 4k+1: h2 (+eps)

    ileg = jnp.maximum(jnp.minimum(p_hi, t_hi) - jnp.maximum(p_lo, t_lo), 0.0)
    inter = ileg * _lane_shift_up(ileg, 1)          # 4k: iw * ih
    area1 = size1 * _lane_shift_up(size1, 1)        # 4k: w1 * h1
    area2 = size2 * _lane_shift_up(size2, 1)        # 4k: w2 * h2
    union = area1 + area2 - inter + eps
    iou = inter * pl.reciprocal(union, approx=True)

    cleg = jnp.maximum(p_hi, t_hi) - jnp.minimum(p_lo, t_lo)   # 4k: cw, 4k+1: ch
    csq = cleg * cleg
    c2 = csq + _lane_shift_up(csq, 1) + eps                     # 4k: cw^2+ch^2+eps
    dleg = (t_lo + t_hi) - (p_lo + p_hi)                        # 4k: dx, 4k+1: dy
    dsq = dleg * dleg
    rho2 = (dsq + _lane_shift_up(dsq, 1)) * 0.25                # 4k: (dx^2+dy^2)/4
    diou = rho2 * pl.reciprocal(c2, approx=True)

    # Keep `a` a python int so this stays a couple of multiplies (no exp/log).
    adiou = lax.integer_pow(diou, a) if isinstance(a, int) else diou ** a
    return 1.0 - iou + adiou                                    # valid at lanes 4k


# ----------------------------------------------------------------------------
# Kernels
# ----------------------------------------------------------------------------
def _adiou_sum_kernel(pred_ref, tgt_ref, out_ref, *, a, eps, n4, block_rows,
                      chunk_rows):
    """Per-block lane partial sums: out_ref is (1, 1, 128)."""
    i = pl.program_id(0)
    nchunks = block_rows // chunk_rows              # static python int
    lane = lax.broadcasted_iota(jnp.int32, (chunk_rows, LANES), 1)
    lane_mod4 = lane & 3
    anchor = lane_mod4 == 0                         # lanes carrying per-box loss
    eps_y = jnp.where(lane_mod4 == 1, jnp.float32(eps), jnp.float32(0.0))

    out_ref[...] = jnp.zeros_like(out_ref)

    def chunk_loss(c):
        if nchunks == 1:
            return _adiou_pair_tile(pred_ref[...], tgt_ref[...], eps_y, a, eps), 0
        start = pl.multiple_of(c * chunk_rows, chunk_rows)
        sl = pl.ds(start, chunk_rows)
        return _adiou_pair_tile(pred_ref[sl, :], tgt_ref[sl, :],
                                eps_y, a, eps), start

    def accumulate(loss, keep):
        out_ref[...] += jnp.sum(jnp.where(keep, loss, 0.0),
                                axis=0, keepdims=True).reshape(1, 1, LANES)

    last = pl.num_programs(0) - 1

    @pl.when(i < last)
    def _():
        # Interior blocks are fully in-bounds: only the anchor-lane mask.
        @pl.loop(0, nchunks)
        def _(c):
            loss, _ = chunk_loss(c)
            accumulate(loss, anchor)

    @pl.when(i == last)
    def _():
        # Last block: mask the ragged / padded tail (element index >= 4*n).
        row = lax.broadcasted_iota(jnp.int32, (chunk_rows, LANES), 0)
        flat0 = row * LANES + lane

        @pl.loop(0, nchunks)
        def _(c):
            loss, start = chunk_loss(c)
            elem = (i * block_rows + start) * LANES + flat0
            accumulate(loss, anchor & (elem < n4))


def _adiou_elem_kernel(pred_ref, tgt_ref, out_ref, *, a, eps, block_rows,
                       chunk_rows):
    """Per-box loss in the interleaved layout (valid at lanes 4k)."""
    nchunks = block_rows // chunk_rows
    lane = lax.broadcasted_iota(jnp.int32, (chunk_rows, LANES), 1)
    eps_y = jnp.where((lane & 3) == 1, jnp.float32(eps), jnp.float32(0.0))

    if nchunks == 1:
        out_ref[...] = _adiou_pair_tile(pred_ref[...], tgt_ref[...], eps_y, a, eps)
    else:
        @pl.loop(0, nchunks)
        def _(c):
            start = pl.multiple_of(c * chunk_rows, chunk_rows)
            sl = pl.ds(start, chunk_rows)
            out_ref[sl, :] = _adiou_pair_tile(pred_ref[sl, :], tgt_ref[sl, :],
                                              eps_y, a, eps)


# ----------------------------------------------------------------------------
# pallas_call wrappers
# ----------------------------------------------------------------------------
def _adiou_sum(pred, target, a, eps):
    """Sum of per-box ADIoU loss over all n boxes (scalar, f32)."""
    n = pred.shape[0]
    pred_r = _to_lane_rows(pred)
    tgt_r = _to_lane_rows(target)
    rows = pred_r.shape[0]
    block_rows, chunk_rows, num_blocks = _plan_tiling(rows)
    block_bytes = block_rows * LANES * pred_r.dtype.itemsize

    kernel = functools.partial(_adiou_sum_kernel, a=a, eps=float(eps), n4=4 * n,
                               block_rows=block_rows, chunk_rows=chunk_rows)

    partials = pl.pallas_call(
        kernel,
        out_shape=jax.ShapeDtypeStruct((num_blocks, 1, LANES), jnp.float32),
        grid_spec=pltpu.PrefetchScalarGridSpec(
            num_scalar_prefetch=0,
            grid=(num_blocks,),
            in_specs=[pl.BlockSpec((block_rows, LANES), lambda i: (i, 0)),
                      pl.BlockSpec((block_rows, LANES), lambda i: (i, 0))],
            out_specs=pl.BlockSpec((1, 1, LANES), lambda i: (i, 0, 0)),
        ),
        compiler_params=pltpu.CompilerParams(
            dimension_semantics=("parallel",),
            vmem_limit_bytes=_vmem_limit(block_bytes)),
    )(pred_r, tgt_r)

    # Tiny final reduce over num_blocks * 128 partial sums.
    return jnp.sum(partials)


def _adiou_elementwise(pred, target, a, eps):
    """Per-box ADIoU loss, shape (n,) f32."""
    n = pred.shape[0]
    pred_r = _to_lane_rows(pred)
    tgt_r = _to_lane_rows(target)
    rows = pred_r.shape[0]
    block_rows, chunk_rows, num_blocks = _plan_tiling(rows)
    block_bytes = block_rows * LANES * pred_r.dtype.itemsize

    kernel = functools.partial(_adiou_elem_kernel, a=a, eps=float(eps),
                               block_rows=block_rows, chunk_rows=chunk_rows)

    loss_rows = pl.pallas_call(
        kernel,
        out_shape=jax.ShapeDtypeStruct((rows, LANES), jnp.float32),
        grid_spec=pltpu.PrefetchScalarGridSpec(
            num_scalar_prefetch=0,
            grid=(num_blocks,),
            in_specs=[pl.BlockSpec((block_rows, LANES), lambda i: (i, 0)),
                      pl.BlockSpec((block_rows, LANES), lambda i: (i, 0))],
            out_specs=pl.BlockSpec((block_rows, LANES), lambda i: (i, 0)),
        ),
        compiler_params=pltpu.CompilerParams(
            dimension_semantics=("parallel",),
            vmem_limit_bytes=_vmem_limit(block_bytes)),
    )(pred_r, tgt_r)

    # Per-box loss sits at flat element index 4*box (the x1 lane of each box).
    return loss_rows.reshape(-1)[: 4 * n].reshape(n, 4)[:, 0]


# ----------------------------------------------------------------------------
# mmdet-compatible wrappers
# ----------------------------------------------------------------------------
def adiou_loss(pred, target, weight=None, reduction='mean', avg_factor=None,
               a=3, eps=1e-7):
    """JAX/Pallas port of mmdet's @weighted_loss adiou_loss."""
    n = pred.shape[0]

    # Fast path (no weight, global reduction): single fused pass with in-kernel
    # partial sums.
    if weight is None and reduction in ('mean', 'sum'):
        total = _adiou_sum(pred, target, a, eps)
        if avg_factor is not None:
            if reduction == 'mean':
                return total / avg_factor
            raise ValueError('avg_factor can not be used with reduction="sum"')
        return total / n if reduction == 'mean' else total

    # General path: per-box loss from the elementwise kernel, then weight /
    # reduce with plain JAX (mirrors mmdet.weight_reduce_loss).
    # TODO(synk): the weighted mean/sum path could stream a pre-broadcast
    # weight plane into the reduction kernel, but the module never forwards
    # `weight` here and the traffic saving is marginal, so weighting stays in
    # XLA.
    loss = _adiou_elementwise(pred, target, a, eps).reshape(n, 1)
    if weight is not None:
        w = jnp.asarray(weight)
        if w.ndim == 1:
            w = w.reshape(n, 1)
        loss = loss * w.astype(loss.dtype)

    if avg_factor is None:
        if reduction == 'mean':
            return loss.mean()
        if reduction == 'sum':
            return loss.sum()
        return loss                      # 'none'
    if reduction == 'mean':
        return loss.sum() / avg_factor
    if reduction == 'none':
        return loss
    raise ValueError('avg_factor can not be used with reduction="sum"')


class ADIoULoss:
    """JAX/Pallas port of mmdet's ADIoULoss forward pass."""

    def __init__(self, eps=1e-6, reduction='mean', loss_weight=1.0,
                 smooth_point=0.1):
        self.eps = eps
        self.reduction = reduction
        self.loss_weight = loss_weight
        # TODO(synk): smooth_point is unused, exactly as in the original module.
        self.smooth_point = smooth_point

    def __call__(self, pred, target, gt_bbox=None, weight=None,
                 avg_factor=None, reduction_override=None, **kwargs):
        # NOTE: like the PyTorch original, this all-zero-weight check needs a
        # concrete weight (forces a device sync; not usable under jit/grad).
        if weight is not None and not bool(jnp.any(weight > 0)):
            if pred.ndim == weight.ndim + 1:
                weight = weight[:, None]
            return (pred * weight).sum()
        assert reduction_override in (None, 'none', 'mean', 'sum')
        reduction = reduction_override if reduction_override else self.reduction
        if weight is not None and weight.ndim > 1:
            assert weight.shape == pred.shape
            weight = weight.mean(-1)
        # Matching the original forward(): `weight` is NOT forwarded to
        # adiou_loss (it is only preprocessed / used by the all-zero check).
        loss = self.loss_weight * adiou_loss(
            pred, target, reduction=reduction, avg_factor=avg_factor,
            eps=self.eps, **kwargs)
        return loss


# ----------------------------------------------------------------------------
# Pure-JAX reference (for the self-test)
# ----------------------------------------------------------------------------
def _adiou_ref(pred, target, a=3, eps=1e-7):
    b1x1, b1y1, b1x2, b1y2 = (pred[:, i] for i in range(4))
    b2x1, b2y1, b2x2, b2y2 = (target[:, i] for i in range(4))
    w1, h1 = b1x2 - b1x1, b1y2 - b1y1 + eps
    w2, h2 = b2x2 - b2x1, b2y2 - b2y1 + eps
    inter = (jnp.maximum(jnp.minimum(b1x2, b2x2) - jnp.maximum(b1x1, b2x1), 0.0) *
             jnp.maximum(jnp.minimum(b1y2, b2y2) - jnp.maximum(b1y1, b2y1), 0.0))
    union = w1 * h1 + w2 * h2 - inter + eps
    iou = inter / union
    cw = jnp.maximum(b1x2, b2x2) - jnp.minimum(b1x1, b2x1)
    ch = jnp.maximum(b1y2, b2y2) - jnp.minimum(b1y1, b2y1)
    c2 = cw ** 2 + ch ** 2 + eps
    rho2 = ((b2x1 + b2x2 - b1x1 - b1x2) ** 2 + (b2y1 + b2y2 - b1y1 - b1y2) ** 2) / 4
    diou = rho2 / c2
    return 1.0 - iou + diou ** a


if __name__ == "__main__":
    key = jax.random.PRNGKey(0)
    k1, k2, k3, k4, k5 = jax.random.split(key, 5)

    def make_boxes(kxy, kwh, n):
        xy = jax.random.uniform(kxy, (n, 2), jnp.float32, 0.0, 10.0)
        wh = jax.random.uniform(kwh, (n, 2), jnp.float32, 1.0, 5.0)
        return jnp.concatenate([xy, xy + wh], axis=1)

    # Tolerance: pl.reciprocal(approx=True) trades a few ULPs vs exact divide.
    TOL = dict(rtol=1e-3, atol=1e-3)

    # --- small case: all reductions / module paths --------------------------
    N = 8
    pred = make_boxes(k1, k2, N)
    target = make_boxes(k3, k4, N)
    weight = jax.random.uniform(k5, (N,), jnp.float32, 0.5, 1.5)

    loss_fn = ADIoULoss(eps=1e-6, reduction='mean', loss_weight=1.0)
    ref = _adiou_ref(pred, target, a=3, eps=1e-6)

    out_mean = loss_fn(pred, target, gt_bbox=None)
    jax.block_until_ready(out_mean)
    assert jnp.allclose(out_mean, ref.mean(), **TOL), (out_mean, ref.mean())

    out_sum = loss_fn(pred, target, gt_bbox=None, reduction_override='sum')
    assert jnp.allclose(out_sum, ref.sum(), **TOL), (out_sum, ref.sum())

    out_none = loss_fn(pred, target, gt_bbox=None, reduction_override='none')
    assert out_none.shape == (N, 1)
    assert jnp.allclose(out_none.reshape(-1), ref, **TOL)

    out_avg = loss_fn(pred, target, gt_bbox=None, avg_factor=2.5)
    assert jnp.allclose(out_avg, ref.sum() / 2.5, **TOL)

    # weighted path of adiou_loss itself (the module never forwards weight).
    out_w = adiou_loss(pred, target, weight=weight, reduction='mean', eps=1e-6)
    assert jnp.allclose(out_w, (ref * weight).mean(), **TOL)

    # all-zero weight early-return path of the module.
    out_zero = loss_fn(pred, target, gt_bbox=None,
                       weight=jnp.zeros((N,), jnp.float32))
    assert jnp.allclose(out_zero, 0.0)

    # --- medium case: zero-copy reshape (4*n % 128 == 0), single block ------
    N3 = 4096
    kk3 = jax.random.split(jax.random.PRNGKey(2), 4)
    pred3 = make_boxes(kk3[0], kk3[1], N3)
    target3 = make_boxes(kk3[2], kk3[3], N3)
    ref3 = _adiou_ref(pred3, target3, a=3, eps=1e-6)
    out3 = loss_fn(pred3, target3, gt_bbox=None)
    jax.block_until_ready(out3)
    assert jnp.allclose(out3, ref3.mean(), **TOL), (out3, ref3.mean())

    # --- large case: multi-block grid, chunked compute, ragged tail mask ----
    N2 = 70000
    kk = jax.random.split(jax.random.PRNGKey(1), 4)
    pred2 = make_boxes(kk[0], kk[1], N2)
    target2 = make_boxes(kk[2], kk[3], N2)
    ref2 = _adiou_ref(pred2, target2, a=3, eps=1e-6)
    out2 = loss_fn(pred2, target2, gt_bbox=None)
    jax.block_until_ready(out2)
    assert jnp.allclose(out2, ref2.mean(), **TOL), (out2, ref2.mean())

    print("KERNEL_OK")
</pallas_src>

<mosaic_0001>
module attributes {stable_mosaic.version = 11 : i64} {
  func.func @_adiou_sum_kernel(%arg0: i32, %arg1: memref<1x128xf32, #tpu.memory_space<vmem>>, %arg2: memref<1x128xf32, #tpu.memory_space<vmem>>, %arg3: memref<1x1x128xf32, #tpu.memory_space<vmem>>) attributes {dimension_semantics = [#tpu.dimension_semantics<parallel>], iteration_bounds = array<i64: 1>, scalar_prefetch = 0 : i64, scratch_operands = 0 : i64, tpu.core_type = #tpu.core_type<tc>, window_params = [{transform_indices = @transform_0, window_bounds = array<i64: 1, 128>}, {transform_indices = @transform_1, window_bounds = array<i64: 1, 128>}, {transform_indices = @transform_2, window_bounds = array<i64: 1, 1, 128>}]} {
    %0 = tpu.iota {dimensions = array<i32: 1>} : vector<1x128xi32>
    %c3_i32 = arith.constant 3 : i32
    %1 = vector.broadcast %c3_i32 : i32 to vector<1x128xi32>
    %2 = arith.andi %0, %1 : vector<1x128xi32>
    %c0_i32 = arith.constant 0 : i32
    %3 = vector.broadcast %c0_i32 : i32 to vector<1x128xi32>
    %4 = arith.cmpi eq, %2, %3 : vector<1x128xi32>
    %c1_i32 = arith.constant 1 : i32
    %5 = vector.broadcast %c1_i32 : i32 to vector<1x128xi32>
    %6 = arith.cmpi eq, %2, %5 : vector<1x128xi32>
    %cst = arith.constant 9.99999997E-7 : f32
    %cst_0 = arith.constant 0.000000e+00 : f32
    %7 = vector.broadcast %cst : f32 to vector<1x128xf32>
    %8 = vector.broadcast %cst_0 : f32 to vector<1x128xf32>
    %9 = arith.select %6, %7, %8 : vector<1x128xi1>, vector<1x128xf32>
    %cst_1 = arith.constant 0.000000e+00 : f32
    %10 = vector.broadcast %cst_1 : f32 to vector<1x1x128xf32>
    %c0 = arith.constant 0 : index
    %c0_2 = arith.constant 0 : index
    %c0_3 = arith.constant 0 : index
    %11 = vector.load %arg3[%c0, %c0_2, %c0_3] : memref<1x1x128xf32, #tpu.memory_space<vmem>>, vector<1x1x128xf32>
    tpu.vector_store %arg3[%c0, %c0_2, %c0_3], %10 {strides = array<i32>} : memref<1x1x128xf32, #tpu.memory_space<vmem>>, vector<1x1x128xf32>,
    %c0_i32_4 = arith.constant 0 : i32
    %12 = arith.cmpi slt, %arg0, %c0_i32_4 : i32
    %13 = arith.extui %12 : i1 to i32
    %c0_i32_5 = arith.constant 0 : i32
    %14 = arith.cmpi ne, %13, %c0_i32_5 : i32
    scf.if %14 {
      %c0_i32_8 = arith.constant 0 : i32
      %c0_9 = arith.constant 0 : index
      %c0_10 = arith.constant 0 : index
      %18 = vector.load %arg1[%c0_9, %c0_10] : memref<1x128xf32, #tpu.memory_space<vmem>>, vector<1x128xf32>
      %c0_11 = arith.constant 0 : index
      %c0_12 = arith.constant 0 : index
      %19 = vector.load %arg2[%c0_11, %c0_12] : memref<1x128xf32, #tpu.memory_space<vmem>>, vector<1x128xf32>
      %c126_i32 = arith.constant 126 : i32
      %20 = tpu.dynamic_rotate %18 by %c126_i32 dim 1 : vector<1x128xf32>, i32 -> vector<1x128xf32>
      %c126_i32_13 = arith.constant 126 : i32
      %21 = tpu.dynamic_rotate %19 by %c126_i32_13 dim 1 : vector<1x128xf32>, i32 -> vector<1x128xf32>
      %22 = arith.subf %20, %18 : vector<1x128xf32>
      %23 = arith.addf %22, %9 : vector<1x128xf32>
      %24 = arith.subf %21, %19 : vector<1x128xf32>
      %25 = arith.addf %24, %9 : vector<1x128xf32>
      %26 = arith.minimumf %20, %21 : vector<1x128xf32>
      %27 = arith.maximumf %18, %19 : vector<1x128xf32>
      %28 = arith.subf %26, %27 : vector<1x128xf32>
      %cst_14 = arith.constant 0.000000e+00 : f32
      %29 = vector.broadcast %cst_14 : f32 to vector<1x128xf32>
      %30 = arith.maximumf %28, %29 : vector<1x128xf32>
      %c127_i32 = arith.constant 127 : i32
      %31 = tpu.dynamic_rotate %30 by %c127_i32 dim 1 : vector<1x128xf32>, i32 -> vector<1x128xf32>
      %32 = arith.mulf %30, %31 : vector<1x128xf32>
      %c127_i32_15 = arith.constant 127 : i32
      %33 = tpu.dynamic_rotate %23 by %c127_i32_15 dim 1 : vector<1x128xf32>, i32 -> vector<1x128xf32>
      %34 = arith.mulf %23, %33 : vector<1x128xf32>
      %c127_i32_16 = arith.constant 127 : i32
      %35 = tpu.dynamic_rotate %25 by %c127_i32_16 dim 1 : vector<1x128xf32>, i32 -> vector<1x128xf32>
      %36 = arith.mulf %25, %35 : vector<1x128xf32>
      %37 = arith.addf %34, %36 : vector<1x128xf32>
      %38 = arith.subf %37, %32 : vector<1x128xf32>
      %cst_17 = arith.constant 9.99999997E-7 : f32
      %39 = vector.broadcast %cst_17 : f32 to vector<1x128xf32>
      %40 = arith.addf %38, %39 : vector<1x128xf32>
      %41 = tpu.reciprocal %40 {approx = true} : vector<1x128xf32> -> vector<1x128xf32>
      %42 = arith.mulf %32, %41 : vector<1x128xf32>
      %43 = arith.maximumf %20, %21 : vector<1x128xf32>
      %44 = arith.minimumf %18, %19 : vector<1x128xf32>
      %45 = arith.subf %43, %44 : vector<1x128xf32>
      %46 = arith.mulf %45, %45 : vector<1x128xf32>
      %c127_i32_18 = arith.constant 127 : i32
      %47 = tpu.dynamic_rotate %46 by %c127_i32_18 dim 1 : vector<1x128xf32>, i32 -> vector<1x128xf32>
      %48 = arith.addf %46, %47 : vector<1x128xf32>
      %cst_19 = arith.constant 9.99999997E-7 : f32
      %49 = vector.broadcast %cst_19 : f32 to vector<1x128xf32>
      %50 = arith.addf %48, %49 : vector<1x128xf32>
      %51 = arith.addf %19, %21 : vector<1x128xf32>
      %52 = arith.addf %18, %20 : vector<1x128xf32>
      %53 = arith.subf %51, %52 : vector<1x128xf32>
      %54 = arith.mulf %53, %53 : vector<1x128xf32>
      %c127_i32_20 = arith.constant 127 : i32
      %55 = tpu.dynamic_rotate %54 by %c127_i32_20 dim 1 : vector<1x128xf32>, i32 -> vector<1x128xf32>
      %56 = arith.addf %54, %55 : vector<1x128xf32>
      %cst_21 = arith.constant 2.500000e-01 : f32
      %57 = vector.broadcast %cst_21 : f32 to vector<1x128xf32>
      %58 = arith.mulf %56, %57 : vector<1x128xf32>
      %59 = tpu.reciprocal %50 {approx = true} : vector<1x128xf32> -> vector<1x128xf32>
      %60 = arith.mulf %58, %59 : vector<1x128xf32>
      %61 = arith.mulf %60, %60 : vector<1x128xf32>
      %62 = arith.mulf %60, %61 : vector<1x128xf32>
      %cst_22 = arith.constant 1.000000e+00 : f32
      %63 = vector.broadcast %cst_22 : f32 to vector<1x128xf32>
      %64 = arith.subf %63, %42 : vector<1x128xf32>
      %65 = arith.addf %64, %62 : vector<1x128xf32>
      %c0_23 = arith.constant 0 : index
      %c0_24 = arith.constant 0 : index
      %c0_25 = arith.constant 0 : index
      %66 = vector.load %arg3[%c0_23, %c0_24, %c0_25] : memref<1x1x128xf32, #tpu.memory_space<vmem>>, vector<1x1x128xf32>
      %cst_26 = arith.constant 0.000000e+00 : f32
      %67 = vector.broadcast %cst_26 : f32 to vector<1x128xf32>
      %68 = arith.select %4, %65, %67 : vector<1x128xi1>, vector<1x128xf32>
      %cst_27 = arith.constant dense<0.000000e+00> : vector<128xf32>
      %69 = vector.multi_reduction <add>, %68, %cst_27 [0] : vector<1x128xf32> to vector<128xf32>
      %70 = vector.shape_cast %69 : vector<128xf32> to vector<1x128xf32>
      %71 = vector.shape_cast %70 : vector<1x128xf32> to vector<1x1x128xf32>
      %72 = arith.addf %66, %71 : vector<1x1x128xf32>
      %c0_28 = arith.constant 0 : index
      %c0_29 = arith.constant 0 : index
      %c0_30 = arith.constant 0 : index
      %73 = vector.load %arg3[%c0_28, %c0_29, %c0_30] : memref<1x1x128xf32, #tpu.memory_space<vmem>>, vector<1x1x128xf32>
      tpu.vector_store %arg3[%c0_28, %c0_29, %c0_30], %72 {strides = array<i32>} : memref<1x1x128xf32, #tpu.memory_space<vmem>>, vector<1x1x128xf32>,
    } else {
    }
    %c0_i32_6 = arith.constant 0 : i32
    %15 = arith.cmpi eq, %arg0, %c0_i32_6 : i32
    %16 = arith.extui %15 : i1 to i32
    %c0_i32_7 = arith.constant 0 : i32
    %17 = arith.cmpi ne, %16, %c0_i32_7 : i32
    scf.if %17 {
      %18 = tpu.iota {dimensions = array<i32: 0>} : vector<1x128xi32>
      %c128_i32 = arith.constant 128 : i32
      %19 = vector.broadcast %c128_i32 : i32 to vector<1x128xi32>
      %20 = arith.muli %18, %19 : vector<1x128xi32>
      %21 = arith.addi %20, %0 : vector<1x128xi32>
      %c0_i32_8 = arith.constant 0 : i32
      %c0_9 = arith.constant 0 : index
      %c0_10 = arith.constant 0 : index
      %22 = vector.load %arg1[%c0_9, %c0_10] : memref<1x128xf32, #tpu.memory_space<vmem>>, vector<1x128xf32>
      %c0_11 = arith.constant 0 : index
      %c0_12 = arith.constant 0 : index
      %23 = vector.load %arg2[%c0_11, %c0_12] : memref<1x128xf32, #tpu.memory_space<vmem>>, vector<1x128xf32>
      %c126_i32 = arith.constant 126 : i32
      %24 = tpu.dynamic_rotate %22 by %c126_i32 dim 1 : vector<1x128xf32>, i32 -> vector<1x128xf32>
      %c126_i32_13 = arith.constant 126 : i32
      %25 = tpu.dynamic_rotate %23 by %c126_i32_13 dim 1 : vector<1x128xf32>, i32 -> vector<1x128xf32>
      %26 = arith.subf %24, %22 : vector<1x128xf32>
      %27 = arith.addf %26, %9 : vector<1x128xf32>
      %28 = arith.subf %25, %23 : vector<1x128xf32>
      %29 = arith.addf %28, %9 : vector<1x128xf32>
      %30 = arith.minimumf %24, %25 : vector<1x128xf32>
      %31 = arith.maximumf %22, %23 : vector<1x128xf32>
      %32 = arith.subf %30, %31 : vector<1x128xf32>
      %cst_14 = arith.constant 0.000000e+00 : f32
      %33 = vector.broadcast %cst_14 : f32 to vector<1x128xf32>
      %34 = arith.maximumf %32, %33 : vector<1x128xf32>
      %c127_i32 = arith.constant 127 : i32
      %35 = tpu.dynamic_rotate %34 by %c127_i32 dim 1 : vector<1x128xf32>, i32 -> vector<1x128xf32>
      %36 = arith.mulf %34, %35 : vector<1x128xf32>
      %c127_i32_15 = arith.constant 127 : i32
      %37 = tpu.dynamic_rotate %27 by %c127_i32_15 dim 1 : vector<1x128xf32>, i32 -> vector<1x128xf32>
      %38 = arith.mulf %27, %37 : vector<1x128xf32>
      %c127_i32_16 = arith.constant 127 : i32
      %39 = tpu.dynamic_rotate %29 by %c127_i32_16 dim 1 : vector<1x128xf32>, i32 -> vector<1x128xf32>
      %40 = arith.mulf %29, %39 : vector<1x128xf32>
      %41 = arith.addf %38, %40 : vector<1x128xf32>
      %42 = arith.subf %41, %36 : vector<1x128xf32>
      %cst_17 = arith.constant 9.99999997E-7 : f32
      %43 = vector.broadcast %cst_17 : f32 to vector<1x128xf32>
      %44 = arith.addf %42, %43 : vector<1x128xf32>
      %45 = tpu.reciprocal %44 {approx = true} : vector<1x128xf32> -> vector<1x128xf32>
      %46 = arith.mulf %36, %45 : vector<1x128xf32>
      %47 = arith.maximumf %24, %25 : vector<1x128xf32>
      %48 = arith.minimumf %22, %23 : vector<1x128xf32>
      %49 = arith.subf %47, %48 : vector<1x128xf32>
      %50 = arith.mulf %49, %49 : vector<1x128xf32>
      %c127_i32_18 = arith.constant 127 : i32
      %51 = tpu.dynamic_rotate %50 by %c127_i32_18 dim 1 : vector<1x128xf32>, i32 -> vector<1x128xf32>
      %52 = arith.addf %50, %51 : vector<1x128xf32>
      %cst_19 = arith.constant 9.99999997E-7 : f32
      %53 = vector.broadcast %cst_19 : f32 to vector<1x128xf32>
      %54 = arith.addf %52, %53 : vector<1x128xf32>
      %55 = arith.addf %23, %25 : vector<1x128xf32>
      %56 = arith.addf %22, %24 : vector<1x128xf32>
      %57 = arith.subf %55, %56 : vector<1x128xf32>
      %58 = arith.mulf %57, %57 : vector<1x128xf32>
      %c127_i32_20 = arith.constant 127 : i32
      %59 = tpu.dynamic_rotate %58 by %c127_i32_20 dim 1 : vector<1x128xf32>, i32 -> vector<1x128xf32>
      %60 = arith.addf %58, %59 : vector<1x128xf32>
      %cst_21 = arith.constant 2.500000e-01 : f32
      %61 = vector.broadcast %cst_21 : f32 to vector<1x128xf32>
      %62 = arith.mulf %60, %61 : vector<1x128xf32>
      %63 = tpu.reciprocal %54 {approx = true} : vector<1x128xf32> -> vector<1x128xf32>
      %64 = arith.mulf %62, %63 : vector<1x128xf32>
      %65 = arith.mulf %64, %64 : vector<1x128xf32>
      %66 = arith.mulf %64, %65 : vector<1x128xf32>
      %cst_22 = arith.constant 1.000000e+00 : f32
      %67 = vector.broadcast %cst_22 : f32 to vector<1x128xf32>
      %68 = arith.subf %67, %46 : vector<1x128xf32>
      %69 = arith.addf %68, %66 : vector<1x128xf32>
      %c1_i32_23 = arith.constant 1 : i32
      %70 = arith.muli %arg0, %c1_i32_23 : i32
      %c0_i32_24 = arith.constant 0 : i32
      %71 = arith.addi %70, %c0_i32_24 : i32
      %c128_i32_25 = arith.constant 128 : i32
      %72 = arith.muli %71, %c128_i32_25 : i32
      %73 = vector.broadcast %72 : i32 to vector<1x128xi32>
      %74 = arith.addi %73, %21 : vector<1x128xi32>
      %c32_i32 = arith.constant 32 : i32
      %75 = vector.broadcast %c32_i32 : i32 to vector<1x128xi32>
      %76 = arith.cmpi slt, %74, %75 : vector<1x128xi32>
      %77 = arith.andi %4, %76 : vector<1x128xi1>
      %c0_26 = arith.constant 0 : index
      %c0_27 = arith.constant 0 : index
      %c0_28 = arith.constant 0 : index
      %78 = vector.load %arg3[%c0_26, %c0_27, %c0_28] : memref<1x1x128xf32, #tpu.memory_space<vmem>>, vector<1x1x128xf32>
      %cst_29 = arith.constant 0.000000e+00 : f32
      %79 = vector.broadcast %cst_29 : f32 to vector<1x128xf32>
      %80 = arith.select %77, %69, %79 : vector<1x128xi1>, vector<1x128xf32>
      %cst_30 = arith.constant dense<0.000000e+00> : vector<128xf32>
      %81 = vector.multi_reduction <add>, %80, %cst_30 [0] : vector<1x128xf32> to vector<128xf32>
      %82 = vector.shape_cast %81 : vector<128xf32> to vector<1x128xf32>
      %83 = vector.shape_cast %82 : vector<1x128xf32> to vector<1x1x128xf32>
      %84 = arith.addf %78, %83 : vector<1x1x128xf32>
      %c0_31 = arith.constant 0 : index
      %c0_32 = arith.constant 0 : index
      %c0_33 = arith.constant 0 : index
      %85 = vector.load %arg3[%c0_31, %c0_32, %c0_33] : memref<1x1x128xf32, #tpu.memory_space<vmem>>, vector<1x1x128xf32>
      tpu.vector_store %arg3[%c0_31, %c0_32, %c0_33], %84 {strides = array<i32>} : memref<1x1x128xf32, #tpu.memory_space<vmem>>, vector<1x1x128xf32>,
    } else {
    }
    return
  }
  func.func @transform_0(%arg0: i32) -> (i32, i32) {
    %c0_i32 = arith.constant 0 : i32
    %c0_i32_0 = arith.constant 0 : i32
    return %arg0, %c0_i32 : i32, i32
  }
  func.func @transform_1(%arg0: i32) -> (i32, i32) {
    %c0_i32 = arith.constant 0 : i32
    %c0_i32_0 = arith.constant 0 : i32
    return %arg0, %c0_i32 : i32, i32
  }
  func.func @transform_2(%arg0: i32) -> (i32, i32, i32) {
    %c0_i32 = arith.constant 0 : i32
    %c0_i32_0 = arith.constant 0 : i32
    %c0_i32_1 = arith.constant 0 : i32
    return %arg0, %c0_i32, %c0_i32_0 : i32, i32, i32
  }
}

</mosaic_0001>

<llo_original>
// kernel: tpu_custom_call.1
$region0: #{tpu_custom_call.1}
  #allocation0 [shape = 'u32[]', space=smem, size = 0x4, offset = 0x4, fixed_abs, tag = 'smem constant byte address 0x4 - core index']
  #allocation1 [shape = 'u32[144,128]{1,0:T(1,128)}', space=vmem, size = 0x12000, scoped, tag = 'internal scratch']
  %s0 = inlined_call_operand.hbm [shape: f32[1,128], index: 0, kind: input, shape index: {}]
  %s1 = inlined_call_operand.vmem [shape: f32[1,128], index: 1, kind: input, shape index: {}]
  %s2 = inlined_call_operand.hbm [shape: f32[1,1,128], index: 2, kind: output, shape index: {}]
  %s3 = sld [smem:[#allocation0]]
  $region30: #{tpu_custom_call.1} parent=0
    _
  %s5 = ssub.s32 1, %s3
  %s6 = scalar_select 0, %s5, %s3
  $region1: #{tpu_custom_call.1} parent=0
    #allocation2 [shape = 'u8[512]{0}', space=vmem, size = 0x400, scoped, tag = 'input window, operand 0, single buffered']
    #allocation3 [shape = 's32[1]{0}', space=sflag, size = 0x4, scoped, tag = 'scoped memory for tpu_custom_call.1']
    #allocation4 [shape = 's32[1]{0}', space=sflag, size = 0x4, scoped, tag = 'scoped memory for tpu_custom_call.1']
    #allocation5 [shape = 'u8[512]{0}', space=vmem, size = 0x400, scoped, tag = 'output window, operand 0, single buffered']
    %7 = vsyncpa [#allocation3], 0
    %8 = vsyncpa [#allocation4], 0
    // Predicated region
    $region2: #{tpu_custom_call.1} parent=1 // pred_check
      _
    $region3: #{tpu_custom_call.1} parent=1 // pred_check_branch
      %10 = sbr.rel (0) target = $region5
    $region4: #{tpu_custom_call.1} parent=1 // pred_region
      %s12 = ssub.s32 16, 16
      %13 = vsyncadd [#allocation3], %s12
      %s15 = sshll.u32 [#allocation2], 4
      %s16 = int_to_ptr.vmem [resolvable:$true] %s15
      %18 = dma.hbm_to_vmem [thread:$0]  %s0, 16, %s16, [#allocation3]
    $region5: #{tpu_custom_call.1} parent=1 // pred_fallthru
      _
    // Predicated region
    $region6: #{tpu_custom_call.1} parent=1 // pred_check
      _
    $region7: #{tpu_custom_call.1} parent=1 // pred_check_branch
      %20 = sbr.rel (0) target = $region9
    $region8: #{tpu_custom_call.1} parent=1 // pred_region
      _
    $region9: #{tpu_custom_call.1} parent=1 // pred_fallthru
      _
    // Predicated region
    $region10: #{tpu_custom_call.1} parent=1 // pred_check
      _
    $region11: #{tpu_custom_call.1} parent=1 // pred_check_branch
      %22 = sbr.rel (0) target = $region13
    $region12: #{tpu_custom_call.1} parent=1 // pred_region
      %23 = dma.done [#allocation3], 16
    $region13: #{tpu_custom_call.1} parent=1 // pred_fallthru
      _
    %v24 = vlaneseq
    %v25 = vand.u32 %v24, 127
    %v26 = vand.u32 %v25, 3
    %vm27 = vcmp.eq.s32.totalorder %v26, 0
    %vm28 = vcmp.eq.s32.totalorder %v26, 1
    %v29 = vsel %vm28, 1e-06, 0.0
    %30 = vst [vmem:[#allocation5] sm:$0x1] 0.0
    %p31 = scmp.lt.s32.totalorder 0, 0
    // Predicated region
    $region14: #{tpu_custom_call.1} parent=1 // pred_check
      %p32 = pneg %p31
    $region15: #{tpu_custom_call.1} parent=1 // pred_check_branch
      %34 = sbr.rel (%p32) target = $region17
    $region16: #{tpu_custom_call.1} parent=1 // pred_region
      %v35 = vld [vmem:[#allocation2] sm:$0x1]
      %v36 = vld [vmem:[%s1] sm:$0x1]
      %37 = vrot.lane.b32.xlu0 %v35, 126
      %v38 = vpop.permute.xlu0 %37
      %39 = vrot.lane.b32.xlu0 %v36, 126
      %v40 = vpop.permute.xlu0 %39
      %v41 = vsub.f32 %v38, %v35
      %v42 = vadd.f32 %v41, %v29
      %v43 = vsub.f32 %v40, %v36
      %v44 = vadd.f32 %v43, %v29
      %v45 = vmin.f32 %v38, %v40
      %v46 = vmax.f32 %v35, %v36
      %v47 = vsub.f32 %v45, %v46
      %v48 = vmax.f32 %v47, 0.0
      %49 = vrot.lane.b32.xlu0 %v48, 127
      %v50 = vpop.permute.xlu0 %49
      %v51 = vmul.f32 %v48, %v50
      %52 = vrot.lane.b32.xlu0 %v42, 127
      %v53 = vpop.permute.xlu0 %52
      %v54 = vmul.f32 %v42, %v53
      %55 = vrot.lane.b32.xlu0 %v44, 127
      %v56 = vpop.permute.xlu0 %55
      %v57 = vmul.f32 %v44, %v56
      %v58 = vadd.f32 %v54, %v57
      %v59 = vsub.f32 %v58, %v51
      %v60 = vadd.f32 %v59, 1e-06
      %v61 = vrcp.pop %v60
      %v62 = vmul.f32 %v51, %v61
      %v63 = vmax.f32 %v38, %v40
      %v64 = vmin.f32 %v35, %v36
      %v65 = vsub.f32 %v63, %v64
      %v66 = vmul.f32 %v65, %v65
      %67 = vrot.lane.b32.xlu0 %v66, 127
      %v68 = vpop.permute.xlu0 %67
      %v69 = vadd.f32 %v66, %v68
      %v70 = vadd.f32 %v69, 1e-06
      %v71 = vadd.f32 %v36, %v40
      %v72 = vadd.f32 %v35, %v38
      %v73 = vsub.f32 %v71, %v72
      %v74 = vmul.f32 %v73, %v73
      %75 = vrot.lane.b32.xlu0 %v74, 127
      %v76 = vpop.permute.xlu0 %75
      %v77 = vadd.f32 %v74, %v76
      %v78 = vmul.f32 %v77, 0.25
      %v79 = vrcp.pop %v70
      %v80 = vmul.f32 %v78, %v79
      %v81 = vmul.f32 %v80, %v80
      %v82 = vmul.f32 %v80, %v81
      %v83 = vsub.f32 1.0, %v62
      %v84 = vadd.f32 %v83, %v82
      %v85 = vld [vmem:[#allocation5] sm:$0x1]
      %v86 = vsel %vm27, %v84, 0.0
      %v87 = vadd.f32 %v86, 0.0
      %v88 = vadd.f32 %v85, %v87
      %89 = vst [vmem:[#allocation5] sm:$0x1] %v88
    $region17: #{tpu_custom_call.1} parent=1 // pred_fallthru
      _
    %p90 = scmp.eq.s32.totalorder 0, 0
    // Predicated region
    $region18: #{tpu_custom_call.1} parent=1 // pred_check
      %p91 = pneg %p90
    $region19: #{tpu_custom_call.1} parent=1 // pred_check_branch
      %93 = sbr.rel (%p91) target = $region21
    $region20: #{tpu_custom_call.1} parent=1 // pred_region
      %v94 = vlaneseq
      %v95 = vshrl.u32 %v94, 7
      %v96 = vmul.u32 %v95, 128
      %v97 = vadd.s32 %v96, %v25
      %v98 = vld [vmem:[#allocation2] sm:$0x1]
      %v99 = vld [vmem:[%s1] sm:$0x1]
      %100 = vrot.lane.b32.xlu0 %v98, 126
      %v101 = vpop.permute.xlu0 %100
      %102 = vrot.lane.b32.xlu0 %v99, 126
      %v103 = vpop.permute.xlu0 %102
      %v104 = vsub.f32 %v101, %v98
      %v105 = vadd.f32 %v104, %v29
      %v106 = vsub.f32 %v103, %v99
      %v107 = vadd.f32 %v106, %v29
      %v108 = vmin.f32 %v101, %v103
      %v109 = vmax.f32 %v98, %v99
      %v110 = vsub.f32 %v108, %v109
      %v111 = vmax.f32 %v110, 0.0
      %112 = vrot.lane.b32.xlu0 %v111, 127
      %v113 = vpop.permute.xlu0 %112
      %v114 = vmul.f32 %v111, %v113
      %115 = vrot.lane.b32.xlu0 %v105, 127
      %v116 = vpop.permute.xlu0 %115
      %v117 = vmul.f32 %v105, %v116
      %118 = vrot.lane.b32.xlu0 %v107, 127
      %v119 = vpop.permute.xlu0 %118
      %v120 = vmul.f32 %v107, %v119
      %v121 = vadd.f32 %v117, %v120
      %v122 = vsub.f32 %v121, %v114
      %v123 = vadd.f32 %v122, 1e-06
      %v124 = vrcp.pop %v123
      %v125 = vmul.f32 %v114, %v124
      %v126 = vmax.f32 %v101, %v103
      %v127 = vmin.f32 %v98, %v99
      %v128 = vsub.f32 %v126, %v127
      %v129 = vmul.f32 %v128, %v128
      %130 = vrot.lane.b32.xlu0 %v129, 127
      %v131 = vpop.permute.xlu0 %130
      %v132 = vadd.f32 %v129, %v131
      %v133 = vadd.f32 %v132, 1e-06
      %v134 = vadd.f32 %v99, %v103
      %v135 = vadd.f32 %v98, %v101
      %v136 = vsub.f32 %v134, %v135
      %v137 = vmul.f32 %v136, %v136
      %138 = vrot.lane.b32.xlu0 %v137, 127
      %v139 = vpop.permute.xlu0 %138
      %v140 = vadd.f32 %v137, %v139
      %v141 = vmul.f32 %v140, 0.25
      %v142 = vrcp.pop %v133
      %v143 = vmul.f32 %v141, %v142
      %v144 = vmul.f32 %v143, %v143
      %v145 = vmul.f32 %v143, %v144
      %v146 = vsub.f32 1.0, %v125
      %v147 = vadd.f32 %v146, %v145
      %s148 = smul.u32 0, 128
      %v149 = vstv %s148
      %v150 = vadd.s32 %v149, %v97
      %vm151 = vcmp.lt.s32.totalorder %v150, 32
      %vm152 = vmand %vm27, %vm151
      %v153 = vld [vmem:[#allocation5] sm:$0x1]
      %v154 = vsel %vm152, %v147, 0.0
      %v155 = vadd.f32 %v154, 0.0
      %v156 = vadd.f32 %v153, %v155
      %157 = vst [vmem:[#allocation5] sm:$0x1] %v156
    $region21: #{tpu_custom_call.1} parent=1 // pred_fallthru
      _
    // Predicated region
    $region22: #{tpu_custom_call.1} parent=1 // pred_check
      _
    $region23: #{tpu_custom_call.1} parent=1 // pred_check_branch
      %159 = sbr.rel (0) target = $region25
    $region24: #{tpu_custom_call.1} parent=1 // pred_region
      %s161 = ssub.s32 16, 16
      %162 = vsyncadd [#allocation4], %s161
      %s164 = sshll.u32 [#allocation5], 4
      %s165 = int_to_ptr.vmem [resolvable:$true] %s164
      %167 = dma.vmem_to_hbm [thread:$0]  %s165, 16, %s2, [#allocation4]
    $region25: #{tpu_custom_call.1} parent=1 // pred_fallthru
      _
    // Predicated region
    $region26: #{tpu_custom_call.1} parent=1 // pred_check
      _
    $region27: #{tpu_custom_call.1} parent=1 // pred_check_branch
      %169 = sbr.rel (0) target = $region29
    $region28: #{tpu_custom_call.1} parent=1 // pred_region
      %170 = dma.done [#allocation4], 16
    $region29: #{tpu_custom_call.1} parent=1 // pred_fallthru
      _
    %171 = vsyncpa [#allocation3], 1
    %172 = vsyncpa [#allocation4], 1

</llo_original>
